<compile_context>
chip_gen: v6e
topology: v6e:2x2x1
jax: 0.10.0
libtpu: 0.0.40
codegen_flags: <defaults>
</compile_context>

<pallas_src>
import jax
import jax.numpy as jnp
from jax import lax
from jax.experimental import pallas as pl
from jax.experimental.pallas import tpu as pltpu

EPS = 1e-5


def linear_relu_bn_kernel(x_ref, w_ref, bgb_ref, o_ref, acc_ref):
    k = pl.program_id(1)

    @pl.when(k == 0)
    def _init():
        acc_ref[...] = jnp.zeros_like(acc_ref)

    # In-kernel bf16 cast for the MXU (VPU work hidden under the DMA);
    # accumulation stays f32.
    x = x_ref[...].astype(jnp.bfloat16)
    w = w_ref[...].astype(jnp.bfloat16)
    acc_ref[...] += jnp.dot(x, w, preferred_element_type=jnp.float32)

    @pl.when(k == pl.num_programs(1) - 1)
    def _epilogue():
        b = bgb_ref[0:1, :]          # (1, tn)
        gamma = bgb_ref[1:2, :]
        beta = bgb_ref[2:3, :]

        y = jnp.maximum(acc_ref[...] + b, 0.0)               # bias + ReLU, f32

        # Single-pass biased batch statistics (full batch resident -> exact).
        inv_n = 1.0 / y.shape[0]
        mean = jnp.sum(y, axis=0, keepdims=True) * inv_n      # (1, tn)
        msq = jnp.sum(y * y, axis=0, keepdims=True) * inv_n
        var = jnp.maximum(msq - mean * mean, 0.0)              # clamp cancellation
        inv_std = lax.rsqrt(var + EPS)                         # EUP

        # Fused affine: one mul + one add over the big (N, tn) tile.
        scale = gamma * inv_std
        shift = beta - mean * scale
        o_ref[...] = (y * scale + shift).astype(o_ref.dtype)


def _vmem_capacity_bytes() -> int:
    try:
        return int(pltpu.get_tpu_info().vmem_capacity_bytes)
    except Exception:
        return 64 << 20  # conservative (v7x per-TC VMEM)


def _pick_tile_n(f_out: int) -> int:
    """Lane-dense F_out tile. Prefer 256-aligned (v6e/v7x MXU) with >= 2 steps."""
    for tn in (1024, 512, 256):
        if f_out % tn == 0 and f_out // tn >= 2:
            return tn
    for tn in (256, 128):
        if f_out % tn == 0 and f_out // tn >= 2:
            return tn
    for tn in (512, 256, 128):
        if f_out % tn == 0:
            return tn
    return f_out  # small / odd F_out: single full-width block


def _pick_tile_k(f_in: int, n_rows: int, x_budget_bytes: int) -> int:
    """F_in reduction tile: largest 128-multiple divisor whose double-buffered
    f32 x block fits the budget, preferring >= 2 reduction steps."""
    cands = [t for t in (1024, 512, 256, 128)
             if f_in % t == 0 and 2 * n_rows * t * 4 <= x_budget_bytes]
    if not cands:
        return f_in
    for t in cands:
        if f_in // t >= 2:
            return t
    return cands[0]


def linear_block_forward(x, w, b, gamma, beta):
    """x: (N, F_in) f32. w: (F_in, F_out). b/gamma/beta: (1, F_out)."""
    N, F_in = x.shape
    F_out = w.shape[1]

    cap = _vmem_capacity_bytes()
    tn = _pick_tile_n(F_out)
    tk = _pick_tile_k(F_in, N, cap // 8)
    grid = (F_out // tn, F_in // tk)   # reduction axis last

    # Pack bias / gamma / beta into one (3, F_out) array: one BlockSpec whose
    # index is constant over k -> fetched once per F_out tile.
    bgb = jnp.concatenate([b, gamma, beta], axis=0)

    # VMEM budget matching the actual buffering.
    tile_bytes = (2 * N * tk * 4        # x tile, double-buffered f32
                  + 2 * tk * tn * 4     # w tile, double-buffered f32
                  + 8 * tn * 4          # packed params (padded to 8 sublanes)
                  + 2 * N * tn * 4      # output tile, double-buffered f32
                  + N * tn * 4)         # accumulator scratch f32
    vmem_limit = int(min(max(tile_bytes + (8 << 20), 16 << 20),
                         cap - (8 << 20)))

    cost = pl.CostEstimate(
        flops=2 * N * F_in * F_out,
        transcendentals=F_out,           # one rsqrt per output feature
        bytes_accessed=(N * F_in * 4 + F_in * F_out * 4
                        + 3 * F_out * 4 + N * F_out * 4),
    )

    return pl.pallas_call(
        linear_relu_bn_kernel,
        out_shape=jax.ShapeDtypeStruct((N, F_out), x.dtype),
        grid_spec=pltpu.PrefetchScalarGridSpec(
            num_scalar_prefetch=0,
            grid=grid,
            in_specs=[
                pl.BlockSpec((N, tk), lambda j, k: (0, k)),    # x
                pl.BlockSpec((tk, tn), lambda j, k: (k, j)),   # w
                pl.BlockSpec((3, tn), lambda j, k: (0, j)),    # b/gamma/beta
            ],
            out_specs=pl.BlockSpec((N, tn), lambda j, k: (0, j)),
            scratch_shapes=[pltpu.VMEM((N, tn), jnp.float32)],
        ),
        compiler_params=pltpu.CompilerParams(
            dimension_semantics=("parallel", "arbitrary"),
            vmem_limit_bytes=vmem_limit,
        ),
        cost_estimate=cost,
    )(x, w, bgb)


def reference_forward(x, w, b, gamma, beta):
    """Pure-JAX f32 reference mirroring PyTorch LinearBlock.forward (train mode)."""
    y = x @ w + b
    y = jnp.maximum(y, 0.0)
    mean = jnp.mean(y, axis=0, keepdims=True)
    var = jnp.mean((y - mean) ** 2, axis=0, keepdims=True)   # biased var
    return (y - mean) / jnp.sqrt(var + EPS) * gamma + beta


if __name__ == "__main__":
    # Small but MXU-meaningful shapes; F_OUT=512 -> tn=256 (2 parallel tiles),
    # F_IN=512 -> tk=256 (2 reduction steps), so both grid axes are exercised.
    N, F_IN, F_OUT = 128, 512, 512

    key = jax.random.PRNGKey(0)
    kx, kw, kb = jax.random.split(key, 3)

    x = jax.random.normal(kx, (N, F_IN), dtype=jnp.float32)

    # Parameter init shapes from nn.Linear / nn.BatchNorm1d:
    #   linear.weight (out, in) stored transposed as (in, out); bn gamma=1, beta=0.
    bound = 1.0 / (F_IN ** 0.5)
    w = jax.random.uniform(kw, (F_IN, F_OUT), minval=-bound, maxval=bound,
                           dtype=jnp.float32)
    b = jax.random.uniform(kb, (1, F_OUT), minval=-bound, maxval=bound,
                           dtype=jnp.float32)
    gamma = jnp.ones((1, F_OUT), dtype=jnp.float32)
    beta = jnp.zeros((1, F_OUT), dtype=jnp.float32)

    out = jax.block_until_ready(linear_block_forward(x, w, b, gamma, beta))
    ref = reference_forward(x, w, b, gamma, beta)

    assert out.shape == (N, F_OUT)
    # In-kernel bf16 MXU operands (f32 accumulation + f32 BN math) vs pure-f32
    # reference -> loosened tolerance on normalized outputs.
    assert jnp.allclose(out, ref, atol=3e-2, rtol=3e-2), "mismatch vs reference"

    print("KERNEL_OK")
</pallas_src>

<mosaic_0001>
module attributes {stable_mosaic.version = 11 : i64} {
  func.func @linear_relu_bn_kernel(%arg0: i32, %arg1: i32, %arg2: memref<128x256xf32, #tpu.memory_space<vmem>>, %arg3: memref<256x256xf32, #tpu.memory_space<vmem>>, %arg4: memref<3x256xf32, #tpu.memory_space<vmem>>, %arg5: memref<128x256xf32, #tpu.memory_space<vmem>>, %arg6: memref<128x256xf32, #tpu.memory_space<vmem>>) attributes {dimension_semantics = [#tpu.dimension_semantics<parallel>, #tpu.dimension_semantics<arbitrary>], iteration_bounds = array<i64: 2, 2>, scalar_prefetch = 0 : i64, scratch_operands = 1 : i64, tpu.core_type = #tpu.core_type<tc>, window_params = [{transform_indices = @transform_0, window_bounds = array<i64: 128, 256>}, {transform_indices = @transform_1, window_bounds = array<i64: 256, 256>}, {transform_indices = @transform_2, window_bounds = array<i64: 3, 256>}, {transform_indices = @transform_3, window_bounds = array<i64: 128, 256>}]} {
    %c0_i32 = arith.constant 0 : i32
    %0 = arith.cmpi eq, %arg1, %c0_i32 : i32
    %1 = arith.extui %0 : i1 to i32
    %c0_i32_0 = arith.constant 0 : i32
    %2 = arith.cmpi ne, %1, %c0_i32_0 : i32
    scf.if %2 {
      %cst_9 = arith.constant 0.000000e+00 : f32
      %14 = vector.broadcast %cst_9 : f32 to vector<128x256xf32>
      %c0_10 = arith.constant 0 : index
      %c0_11 = arith.constant 0 : index
      %15 = vector.load %arg6[%c0_10, %c0_11] : memref<128x256xf32, #tpu.memory_space<vmem>>, vector<128x256xf32>
      tpu.vector_store %arg6[%c0_10, %c0_11], %14 {strides = array<i32>} : memref<128x256xf32, #tpu.memory_space<vmem>>, vector<128x256xf32>,
    } else {
    }
    %c0 = arith.constant 0 : index
    %c0_1 = arith.constant 0 : index
    %3 = vector.load %arg2[%c0, %c0_1] : memref<128x256xf32, #tpu.memory_space<vmem>>, vector<128x256xf32>
    %4 = arith.truncf %3 : vector<128x256xf32> to vector<128x256xbf16>
    %c0_2 = arith.constant 0 : index
    %c0_3 = arith.constant 0 : index
    %5 = vector.load %arg3[%c0_2, %c0_3] : memref<256x256xf32, #tpu.memory_space<vmem>>, vector<256x256xf32>
    %6 = arith.truncf %5 : vector<256x256xf32> to vector<256x256xbf16>
    %c0_4 = arith.constant 0 : index
    %c0_5 = arith.constant 0 : index
    %7 = vector.load %arg6[%c0_4, %c0_5] : memref<128x256xf32, #tpu.memory_space<vmem>>, vector<128x256xf32>
    %cst = arith.constant dense<0.000000e+00> : vector<128x256xf32>
    %8 = tpu.matmul %4, %6, %cst {dimension_numbers = #tpu.dot_dimension_numbers<[1], [0], [0], [1], [0, 0, 1, 1], [], []>} : vector<128x256xbf16>, vector<256x256xbf16>, vector<128x256xf32> -> vector<128x256xf32>
    %9 = arith.addf %7, %8 : vector<128x256xf32>
    %c0_6 = arith.constant 0 : index
    %c0_7 = arith.constant 0 : index
    %10 = vector.load %arg6[%c0_6, %c0_7] : memref<128x256xf32, #tpu.memory_space<vmem>>, vector<128x256xf32>
    tpu.vector_store %arg6[%c0_6, %c0_7], %9 {strides = array<i32>} : memref<128x256xf32, #tpu.memory_space<vmem>>, vector<128x256xf32>,
    %c1_i32 = arith.constant 1 : i32
    %11 = arith.cmpi eq, %arg1, %c1_i32 : i32
    %12 = arith.extui %11 : i1 to i32
    %c0_i32_8 = arith.constant 0 : i32
    %13 = arith.cmpi ne, %12, %c0_i32_8 : i32
    scf.if %13 {
      %c0_9 = arith.constant 0 : index
      %c0_10 = arith.constant 0 : index
      %14 = vector.load %arg4[%c0_9, %c0_10] : memref<3x256xf32, #tpu.memory_space<vmem>>, vector<1x256xf32>
      %c1 = arith.constant 1 : index
      %c0_11 = arith.constant 0 : index
      %15 = vector.load %arg4[%c1, %c0_11] : memref<3x256xf32, #tpu.memory_space<vmem>>, vector<1x256xf32>
      %c2 = arith.constant 2 : index
      %c0_12 = arith.constant 0 : index
      %16 = vector.load %arg4[%c2, %c0_12] : memref<3x256xf32, #tpu.memory_space<vmem>>, vector<1x256xf32>
      %c0_13 = arith.constant 0 : index
      %c0_14 = arith.constant 0 : index
      %17 = vector.load %arg6[%c0_13, %c0_14] : memref<128x256xf32, #tpu.memory_space<vmem>>, vector<128x256xf32>
      %18 = vector.broadcast %14 : vector<1x256xf32> to vector<128x256xf32>
      %19 = arith.addf %17, %18 : vector<128x256xf32>
      %cst_15 = arith.constant 0.000000e+00 : f32
      %20 = vector.broadcast %cst_15 : f32 to vector<128x256xf32>
      %21 = arith.maximumf %19, %20 : vector<128x256xf32>
      %cst_16 = arith.constant dense<0.000000e+00> : vector<256xf32>
      %22 = vector.multi_reduction <add>, %21, %cst_16 [0] : vector<128x256xf32> to vector<256xf32>
      %23 = vector.shape_cast %22 : vector<256xf32> to vector<1x256xf32>
      %cst_17 = arith.constant 7.812500e-03 : f32
      %24 = vector.broadcast %cst_17 : f32 to vector<1x256xf32>
      %25 = arith.mulf %23, %24 : vector<1x256xf32>
      %26 = arith.mulf %21, %21 : vector<128x256xf32>
      %cst_18 = arith.constant dense<0.000000e+00> : vector<256xf32>
      %27 = vector.multi_reduction <add>, %26, %cst_18 [0] : vector<128x256xf32> to vector<256xf32>
      %28 = vector.shape_cast %27 : vector<256xf32> to vector<1x256xf32>
      %cst_19 = arith.constant 7.812500e-03 : f32
      %29 = vector.broadcast %cst_19 : f32 to vector<1x256xf32>
      %30 = arith.mulf %28, %29 : vector<1x256xf32>
      %31 = arith.mulf %25, %25 : vector<1x256xf32>
      %32 = arith.subf %30, %31 : vector<1x256xf32>
      %cst_20 = arith.constant 0.000000e+00 : f32
      %33 = vector.broadcast %cst_20 : f32 to vector<1x256xf32>
      %34 = arith.maximumf %32, %33 : vector<1x256xf32>
      %cst_21 = arith.constant 9.99999974E-6 : f32
      %35 = vector.broadcast %cst_21 : f32 to vector<1x256xf32>
      %36 = arith.addf %34, %35 : vector<1x256xf32>
      %37 = math.rsqrt %36 : vector<1x256xf32>
      %38 = arith.mulf %15, %37 : vector<1x256xf32>
      %39 = arith.mulf %25, %38 : vector<1x256xf32>
      %40 = arith.subf %16, %39 : vector<1x256xf32>
      %41 = vector.broadcast %38 : vector<1x256xf32> to vector<128x256xf32>
      %42 = arith.mulf %21, %41 : vector<128x256xf32>
      %43 = vector.broadcast %40 : vector<1x256xf32> to vector<128x256xf32>
      %44 = arith.addf %42, %43 : vector<128x256xf32>
      %c0_22 = arith.constant 0 : index
      %c0_23 = arith.constant 0 : index
      %45 = vector.load %arg5[%c0_22, %c0_23] : memref<128x256xf32, #tpu.memory_space<vmem>>, vector<128x256xf32>
      tpu.vector_store %arg5[%c0_22, %c0_23], %44 {strides = array<i32>} : memref<128x256xf32, #tpu.memory_space<vmem>>, vector<128x256xf32>,
    } else {
    }
    return
  }
  func.func @transform_0(%arg0: i32, %arg1: i32) -> (i32, i32) {
    %c0_i32 = arith.constant 0 : i32
    %c0_i32_0 = arith.constant 0 : i32
    return %c0_i32, %arg1 : i32, i32
  }
  func.func @transform_1(%arg0: i32, %arg1: i32) -> (i32, i32) {
    %c0_i32 = arith.constant 0 : i32
    return %arg1, %arg0 : i32, i32
  }
  func.func @transform_2(%arg0: i32, %arg1: i32) -> (i32, i32) {
    %c0_i32 = arith.constant 0 : i32
    %c0_i32_0 = arith.constant 0 : i32
    return %c0_i32, %arg0 : i32, i32
  }
  func.func @transform_3(%arg0: i32, %arg1: i32) -> (i32, i32) {
    %c0_i32 = arith.constant 0 : i32
    %c0_i32_0 = arith.constant 0 : i32
    return %c0_i32, %arg0 : i32, i32
  }
}

</mosaic_0001>

<llo_original>
// kernel: tpu_custom_call.1
$region0: #{tpu_custom_call.1}
  #allocation0 [shape = 'u32[]', space=smem, size = 0x4, offset = 0x4, fixed_abs, tag = 'smem constant byte address 0x4 - core index']
  #allocation1 [shape = 'u32[144,128]{1,0:T(1,128)}', space=vmem, size = 0x12000, scoped, tag = 'internal scratch']
  #allocation2 [shape = 'f32[128,256]{1,0:T(8,128)}', space=vmem, size = 0x20000, scoped, tag = 'scratch operand']
  %s0 = inlined_call_operand.hbm [shape: f32[128,512], index: 0, kind: input, shape index: {}]
  %s1 = inlined_call_operand.hbm [shape: f32[512,512], index: 1, kind: input, shape index: {}]
  %s2 = inlined_call_operand.hbm [shape: f32[3,512], index: 2, kind: input, shape index: {}]
  %s3 = inlined_call_operand.hbm [shape: f32[128,512], index: 3, kind: output, shape index: {}]
  %s4 = sld [smem:[#allocation0]]
  $region65: #{tpu_custom_call.1} parent=0
    _
  %s6 = ssub.s32 1, %s4
  %s7 = scalar_select 0, %s6, %s4
  $region1: #{tpu_custom_call.1} parent=0
    #allocation3 [shape = 'u8[262144]{0}', space=vmem, size = 0x40000, scoped, tag = 'input window, operand 0']
    #allocation4 [shape = 's32[2]{0}', space=sflag, size = 0x8, scoped, tag = 'scoped memory for tpu_custom_call.1']
    #allocation5 [shape = 's32[2]{0}', space=sflag, size = 0x8, scoped, tag = 'scoped memory for tpu_custom_call.1']
    #allocation6 [shape = 'u8[524288]{0}', space=vmem, size = 0x80000, scoped, tag = 'input window, operand 1']
    #allocation7 [shape = 's32[2]{0}', space=sflag, size = 0x8, scoped, tag = 'scoped memory for tpu_custom_call.1']
    #allocation8 [shape = 'u8[8192]{0}', space=vmem, size = 0x2000, scoped, tag = 'input window, operand 2']
    #allocation9 [shape = 'u8[262144]{0}', space=vmem, size = 0x40000, scoped, tag = 'output window, operand 0']
    %8 = vsyncpa [#allocation4], 0
    %s9 = scalar_lea.sflag [#allocation4], 1
    %10 = vsyncpa %s9, 0
    %11 = vsyncpa [#allocation7], 0
    %s12 = scalar_lea.sflag [#allocation7], 1
    %13 = vsyncpa %s12, 0
    %14 = vsyncpa [#allocation5], 0
    %s15 = scalar_lea.sflag [#allocation5], 1
    %16 = vsyncpa %s15, 0
    loop: start=0, step=1, limit=6
    $region2: #{tpu_custom_call.1} parent=1 // loop_pre_header
      _
    $region3: #{tpu_custom_call.1} parent=1 // loop_header
      %s18 = sphi 0, %s22
      %p19 = scmp.ge.s32.totalorder %s18, 6
      %s25 = sphi 0, %s37
      %s26 = sphi 0, %s33
      %s27 = sphi 0, %s25
      %s28 = sphi 0, %s26
      %s29 = sphi 0, %s27
      %s30 = sphi 0, %s28
      %s40 = sphi 0, %s42
      %s43 = sphi 0, %s40
      %s44 = sphi 0, %s43
      %s60 = sphi 0, %s44
      %s68 = sphi 0, %s70
      %s71 = sphi 0, %s68
      %s72 = sphi 0, %s71
      %s88 = sphi 0, %s72
      %s94 = sphi 0, %s96
      %s97 = sphi 0, %s94
      %s98 = sphi 0, %s97
      %s114 = sphi 0, %s98
      %s120 = sphi 0, %s122
      %s123 = sphi 0, %s120
      %s124 = sphi 0, %s123
      %s140 = sphi 0, %s124
    $region4: #{tpu_custom_call.1} parent=1 // loop_header_branch
      %21 = sbr.rel (%p19) target = $region8
    $region5: #{tpu_custom_call.1} parent=1 // loop_body
      %s23 = ssub.s32 %s18, 1
      %s24 = ssub.s32 %s18, 2
      %s31 = sadd.s32 1, %s26
      %p32 = scmp.ge.s32.totalorder %s31, 2
      %s33 = scalar_select %p32, 0, %s31
      %s34 = sadd.s32 1, %s25
      %s35 = scalar_select %p32, %s34, %s25
      %p36 = scmp.ge.s32.totalorder %s35, 2
      %s37 = scalar_select %p36, 0, %s35
      %s38 = ssub.s32 %s26, %s33
      %p39 = scmp.eq.s32.totalorder %s38, 0
      %s41 = sadd.s32 %s40, 1
      %s42 = scalar_select %p39, %s40, %s41
      %p45 = pneg %p39
      %p46 = scmp.eq.s32.totalorder %s18, 3
      %p47 = por %p45, %p46
      %p48 = scmp.ne.s32.totalorder %s40, %s43
      %p49 = scmp.eq.s32.totalorder %s18, 0
      %p50 = por %p48, %p49
      %p51 = scmp.ne.s32.totalorder %s40, %s43
      %p52 = scmp.eq.s32.totalorder %s23, 3
      %p53 = por %p51, %p52
      %p54 = scmp.ne.s32.totalorder %s43, %s44
      %p55 = scmp.eq.s32.totalorder %s23, 0
      %p56 = por %p54, %p55
      %p57 = scmp.ne.s32.totalorder %s43, %s44
      %p58 = scmp.eq.s32.totalorder %s24, 3
      %p59 = por %p57, %p58
      %p61 = scmp.ne.s32.totalorder %s44, %s60
      %p62 = scmp.eq.s32.totalorder %s24, 0
      %p63 = por %p61, %p62
      %s64 = ssub.s32 %s26, %s33
      %s65 = ssub.s32 %s25, %s37
      %s66 = sor.u32 %s64, %s65
      %p67 = scmp.eq.s32.totalorder %s66, 0
      %s69 = sadd.s32 %s68, 1
      %s70 = scalar_select %p67, %s68, %s69
      %p73 = pneg %p67
      %p74 = scmp.eq.s32.totalorder %s18, 3
      %p75 = por %p73, %p74
      %p76 = scmp.ne.s32.totalorder %s68, %s71
      %p77 = scmp.eq.s32.totalorder %s18, 0
      %p78 = por %p76, %p77
      %p79 = scmp.ne.s32.totalorder %s68, %s71
      %p80 = scmp.eq.s32.totalorder %s23, 3
      %p81 = por %p79, %p80
      %p82 = scmp.ne.s32.totalorder %s71, %s72
      %p83 = scmp.eq.s32.totalorder %s23, 0
      %p84 = por %p82, %p83
      %p85 = scmp.ne.s32.totalorder %s71, %s72
      %p86 = scmp.eq.s32.totalorder %s24, 3
      %p87 = por %p85, %p86
      %p89 = scmp.ne.s32.totalorder %s72, %s88
      %p90 = scmp.eq.s32.totalorder %s24, 0
      %p91 = por %p89, %p90
      %s92 = ssub.s32 %s25, %s37
      %p93 = scmp.eq.s32.totalorder %s92, 0
      %s95 = sadd.s32 %s94, 1
      %s96 = scalar_select %p93, %s94, %s95
      %p99 = pneg %p93
      %p100 = scmp.eq.s32.totalorder %s18, 3
      %p101 = por %p99, %p100
      %p102 = scmp.ne.s32.totalorder %s94, %s97
      %p103 = scmp.eq.s32.totalorder %s18, 0
      %p104 = por %p102, %p103
      %p105 = scmp.ne.s32.totalorder %s94, %s97
      %p106 = scmp.eq.s32.totalorder %s23, 3
      %p107 = por %p105, %p106
      %p108 = scmp.ne.s32.totalorder %s97, %s98
      %p109 = scmp.eq.s32.totalorder %s23, 0
      %p110 = por %p108, %p109
      %p111 = scmp.ne.s32.totalorder %s97, %s98
      %p112 = scmp.eq.s32.totalorder %s24, 3
      %p113 = por %p111, %p112
      %p115 = scmp.ne.s32.totalorder %s98, %s114
      %p116 = scmp.eq.s32.totalorder %s24, 0
      %p117 = por %p115, %p116
      %s118 = ssub.s32 %s25, %s37
      %p119 = scmp.eq.s32.totalorder %s118, 0
      %s121 = sadd.s32 %s120, 1
      %s122 = scalar_select %p119, %s120, %s121
      %p125 = pneg %p119
      %p126 = scmp.eq.s32.totalorder %s18, 3
      %p127 = por %p125, %p126
      %p128 = scmp.ne.s32.totalorder %s120, %s123
      %p129 = scmp.eq.s32.totalorder %s18, 0
      %p130 = por %p128, %p129
      %p131 = scmp.ne.s32.totalorder %s120, %s123
      %p132 = scmp.eq.s32.totalorder %s23, 3
      %p133 = por %p131, %p132
      %p134 = scmp.ne.s32.totalorder %s123, %s124
      %p135 = scmp.eq.s32.totalorder %s23, 0
      %p136 = por %p134, %p135
      %p137 = scmp.ne.s32.totalorder %s123, %s124
      %p138 = scmp.eq.s32.totalorder %s24, 3
      %p139 = por %p137, %p138
      %p141 = scmp.ne.s32.totalorder %s124, %s140
      %p142 = scmp.eq.s32.totalorder %s24, 0
      %p143 = por %p141, %p142
      %p144 = scmp.le.s32.totalorder 1, %s18
      %p145 = scmp.lt.s32.totalorder %s18, 5
      %p146 = pnand %p144, %p145
      %p147 = pneg %p146
      // Predicated region
      $region9: #{tpu_custom_call.1} parent=5 // pred_check
        _
      $region10: #{tpu_custom_call.1} parent=5 // pred_check_branch
        %149 = sbr.rel (%p146) target = $region12
      $region11: #{tpu_custom_call.1} parent=5 // pred_region
        %s150 = ssub.s32 %s18, 1
      $region12: #{tpu_custom_call.1} parent=5 // pred_fallthru
        _
      %p151 = scmp.lt.s32.totalorder %s18, 4
      // Predicated region
      $region13: #{tpu_custom_call.1} parent=5 // pred_check
        %p152 = pneg %p151
      $region14: #{tpu_custom_call.1} parent=5 // pred_check_branch
        %154 = sbr.rel (%p152) target = $region16
      $region15: #{tpu_custom_call.1} parent=5 // pred_region
        // Predicated region
        $region17: #{tpu_custom_call.1} parent=15 // pred_check
          %p155 = pneg %p50
        $region18: #{tpu_custom_call.1} parent=15 // pred_check_branch
          %157 = sbr.rel (%p155) target = $region20
        $region19: #{tpu_custom_call.1} parent=15 // pred_region
          %s158 = sand.u32 %s40, 1
          %s159 = scalar_lea.sflag [#allocation4], %s158
          %s160 = sand.u32 %s40, 1
          %s161 = smul.addr %s160, 256
          %s162 = scalar_lea.vmem [#allocation3], %s161
          %s163 = smul.u32 2, %s26
          %s165 = ssub.s32 4096, 4096
          %166 = vsyncadd %s159, %s165
          %s167 = smul.addr %s163, 128
          %s168 = scalar_lea.hbm %s0, %s167
          %s169 = sshll.u32 %s162, 4
          %s170 = int_to_ptr.vmem [resolvable:$true] %s169
          %175 = dma.hbm_to_vmem [thread:$0]  %s168, 4096, %s170, %s159, 512, 256, 16
        $region20: #{tpu_custom_call.1} parent=15 // pred_fallthru
          _
        // Predicated region
        $region21: #{tpu_custom_call.1} parent=15 // pred_check
          %p176 = pneg %p78
        $region22: #{tpu_custom_call.1} parent=15 // pred_check_branch
          %178 = sbr.rel (%p176) target = $region24
        $region23: #{tpu_custom_call.1} parent=15 // pred_region
          %s179 = sand.u32 %s18, 1
          %s180 = scalar_lea.sflag [#allocation7], %s179
          %s181 = sand.u32 %s68, 1
          %s182 = smul.addr %s181, 512
          %s183 = scalar_lea.vmem [#allocation6], %s182
          %s184 = smul.u32 32, %s26
          %s185 = smul.u32 2, %s25
          %s187 = ssub.s32 8192, 8192
          %188 = vsyncadd %s180, %s187
          %s189 = smul.addr %s184, 4
          %s190 = sadd.s32 %s185, %s189
          %s191 = smul.addr %s190, 128
          %s192 = scalar_lea.hbm %s1, %s191
          %s193 = sshll.u32 %s183, 4
          %s194 = int_to_ptr.vmem [resolvable:$true] %s193
          %199 = dma.hbm_to_vmem [thread:$0]  %s192, 8192, %s194, %s180, 512, 256, 16
        $region24: #{tpu_custom_call.1} parent=15 // pred_fallthru
          _
        // Predicated region
        $region25: #{tpu_custom_call.1} parent=15 // pred_check
          %p200 = pneg %p104
        $region26: #{tpu_custom_call.1} parent=15 // pred_check_branch
          %202 = sbr.rel (%p200) target = $region28
        $region27: #{tpu_custom_call.1} parent=15 // pred_region
          %s203 = sand.u32 %s18, 1
          %s204 = scalar_lea.sflag [#allocation7], %s203
          %s205 = sand.u32 %s94, 1
          %s206 = smul.addr %s205, 8
          %s207 = scalar_lea.vmem [#allocation8], %s206
          %s208 = smul.u32 2, %s25
          %s210 = ssub.s32 128, 128
          %211 = vsyncadd %s204, %s210
          %s212 = smul.addr %s208, 64
          %s213 = scalar_lea.hbm %s2, %s212
          %s215 = sshll.u32 %s207, 4
          %s216 = int_to_ptr.vmem [resolvable:$true] %s215
          %218 = dma.hbm_to_vmem [thread:$0]  %s213, 128, %s216, %s204
        $region28: #{tpu_custom_call.1} parent=15 // pred_fallthru
          _
      $region16: #{tpu_custom_call.1} parent=5 // pred_fallthru
        _
      %p219 = scmp.le.s32.totalorder 1, %s18
      %p220 = scmp.lt.s32.totalorder %s18, 5
      %p221 = pnand %p219, %p220
      %p222 = pneg %p221
      // Predicated region
      $region29: #{tpu_custom_call.1} parent=5 // pred_check
        _
      $region30: #{tpu_custom_call.1} parent=5 // pred_check_branch
        %224 = sbr.rel (%p221) target = $region32
      $region31: #{tpu_custom_call.1} parent=5 // pred_region
        %s225 = ssub.s32 %s18, 1
        %s226 = sand.u32 %s43, 1
        %s227 = scalar_lea.sflag [#allocation4], %s226
        %s228 = sand.u32 %s43, 1
        %s229 = smul.addr %s228, 256
        %s230 = scalar_lea.vmem [#allocation3], %s229
        // Predicated region
        $region33: #{tpu_custom_call.1} parent=31 // pred_check
          %p231 = pneg %p56
        $region34: #{tpu_custom_call.1} parent=31 // pred_check_branch
          %233 = sbr.rel (%p231) target = $region36
        $region35: #{tpu_custom_call.1} parent=31 // pred_region
          %234 = dma.done %s227, 4096
        $region36: #{tpu_custom_call.1} parent=31 // pred_fallthru
          _
        %s235 = sand.u32 %s23, 1
        %s236 = scalar_lea.sflag [#allocation7], %s235
        %s237 = sand.u32 %s71, 1
        %s238 = smul.addr %s237, 512
        %s239 = scalar_lea.vmem [#allocation6], %s238
        // Predicated region
        $region37: #{tpu_custom_call.1} parent=31 // pred_check
          %p240 = pneg %p84
        $region38: #{tpu_custom_call.1} parent=31 // pred_check_branch
          %242 = sbr.rel (%p240) target = $region40
        $region39: #{tpu_custom_call.1} parent=31 // pred_region
          %243 = dma.done %s236, 8192
        $region40: #{tpu_custom_call.1} parent=31 // pred_fallthru
          _
        %s244 = sand.u32 %s23, 1
        %s245 = scalar_lea.sflag [#allocation7], %s244
        %s246 = sand.u32 %s97, 1
        %s247 = smul.addr %s246, 8
        %s248 = scalar_lea.vmem [#allocation8], %s247
        // Predicated region
        $region41: #{tpu_custom_call.1} parent=31 // pred_check
          %p249 = pneg %p110
        $region42: #{tpu_custom_call.1} parent=31 // pred_check_branch
          %251 = sbr.rel (%p249) target = $region44
        $region43: #{tpu_custom_call.1} parent=31 // pred_region
          %252 = dma.done %s245, 128
        $region44: #{tpu_custom_call.1} parent=31 // pred_fallthru
          _
        %s253 = sand.u32 %s43, 1
        %s254 = scalar_lea.sflag [#allocation4], %s253
        %s255 = sand.u32 %s43, 1
        %s256 = smul.addr %s255, 256
        %s257 = scalar_lea.vmem [#allocation3], %s256
        %p258 = pneg %p56
        %p259 = pneg %p53
        %s260 = sand.u32 %s23, 1
        %s261 = scalar_lea.sflag [#allocation7], %s260
        %s262 = sand.u32 %s71, 1
        %s263 = smul.addr %s262, 512
        %s264 = scalar_lea.vmem [#allocation6], %s263
        %p265 = pneg %p84
        %p266 = pneg %p81
        %s267 = sand.u32 %s23, 1
        %s268 = scalar_lea.sflag [#allocation7], %s267
        %s269 = sand.u32 %s97, 1
        %s270 = smul.addr %s269, 8
        %s271 = scalar_lea.vmem [#allocation8], %s270
        %p272 = pneg %p110
        %p273 = pneg %p107
        %p274 = pneg %p136
        %p275 = pneg %p133
        %s276 = sand.u32 %s123, 1
        %s277 = scalar_lea.sflag [#allocation5], %s276
        %s278 = sand.u32 %s123, 1
        %s279 = smul.addr %s278, 256
        %s280 = scalar_lea.vmem [#allocation9], %s279
        %s281 = smul.u32 2, %s28
        %s282 = smul.u32 32, %s28
        %s283 = smul.u32 2, %s27
        %s284 = smul.u32 2, %s27
        %s285 = smul.u32 2, %s27
        %p286 = scmp.eq.s32.totalorder %s28, 0
        // Predicated region
        $region45: #{tpu_custom_call.1} parent=31 // pred_check
          %p287 = pneg %p286
        $region46: #{tpu_custom_call.1} parent=31 // pred_check_branch
          %289 = sbr.rel (%p287) target = $region48
        $region47: #{tpu_custom_call.1} parent=31 // pred_region
          %290 = vst [vmem:[#allocation2] sm:$0xff] 0.0
          %291 = vst [vmem:[#allocation2 + $0x8] sm:$0xff] 0.0
          %292 = vst [vmem:[#allocation2 + $0x10] sm:$0xff] 0.0
          %293 = vst [vmem:[#allocation2 + $0x18] sm:$0xff] 0.0
          %294 = vst [vmem:[#allocation2 + $0x20] sm:$0xff] 0.0
          %295 = vst [vmem:[#allocation2 + $0x28] sm:$0xff] 0.0
          %296 = vst [vmem:[#allocation2 + $0x30] sm:$0xff] 0.0
          %297 = vst [vmem:[#allocation2 + $0x38] sm:$0xff] 0.0
          %298 = vst [vmem:[#allocation2 + $0x40] sm:$0xff] 0.0
          %299 = vst [vmem:[#allocation2 + $0x48] sm:$0xff] 0.0
          %300 = vst [vmem:[#allocation2 + $0x50] sm:$0xff] 0.0
          %301 = vst [vmem:[#allocation2 + $0x58] sm:$0xff] 0.0
          %302 = vst [vmem:[#allocation2 + $0x60] sm:$0xff] 0.0
          %303 = vst [vmem:[#allocation2 + $0x68] sm:$0xff] 0.0
          %304 = vst [vmem:[#allocation2 + $0x70] sm:$0xff] 0.0
          %305 = vst [vmem:[#allocation2 + $0x78] sm:$0xff] 0.0
          %306 = vst [vmem:[#allocation2 + $0x80] sm:$0xff] 0.0
          %307 = vst [vmem:[#allocation2 + $0x88] sm:$0xff] 0.0
          %308 = vst [vmem:[#allocation2 + $0x90] sm:$0xff] 0.0
          %309 = vst [vmem:[#allocation2 + $0x98] sm:$0xff] 0.0
          %310 = vst [vmem:[#allocation2 + $0xa0] sm:$0xff] 0.0
          %311 = vst [vmem:[#allocation2 + $0xa8] sm:$0xff] 0.0
          %312 = vst [vmem:[#allocation2 + $0xb0] sm:$0xff] 0.0
          %313 = vst [vmem:[#allocation2 + $0xb8] sm:$0xff] 0.0
          %314 = vst [vmem:[#allocation2 + $0xc0] sm:$0xff] 0.0
          %315 = vst [vmem:[#allocation2 + $0xc8] sm:$0xff] 0.0
          %316 = vst [vmem:[#allocation2 + $0xd0] sm:$0xff] 0.0
          %317 = vst [vmem:[#allocation2 + $0xd8] sm:$0xff] 0.0
          %318 = vst [vmem:[#allocation2 + $0xe0] sm:$0xff] 0.0
          %319 = vst [vmem:[#allocation2 + $0xe8] sm:$0xff] 0.0
          %320 = vst [vmem:[#allocation2 + $0xf0] sm:$0xff] 0.0
          %321 = vst [vmem:[#allocation2 + $0xf8] sm:$0xff] 0.0
        $region48: #{tpu_custom_call.1} parent=31 // pred_fallthru
          _
        %v322 = vld [vmem:[%s230] sm:$0xff]
        %v323 = vld [vmem:[%s230 + $0x8] sm:$0xff]
        %v324 = vld [vmem:[%s230 + $0x10] sm:$0xff]
        %v325 = vld [vmem:[%s230 + $0x18] sm:$0xff]
        %v326 = vld [vmem:[%s230 + $0x20] sm:$0xff]
        %v327 = vld [vmem:[%s230 + $0x28] sm:$0xff]
        %v328 = vld [vmem:[%s230 + $0x30] sm:$0xff]
        %v329 = vld [vmem:[%s230 + $0x38] sm:$0xff]
        %v330 = vld [vmem:[%s230 + $0x40] sm:$0xff]
        %v331 = vld [vmem:[%s230 + $0x48] sm:$0xff]
        %v332 = vld [vmem:[%s230 + $0x50] sm:$0xff]
        %v333 = vld [vmem:[%s230 + $0x58] sm:$0xff]
        %v334 = vld [vmem:[%s230 + $0x60] sm:$0xff]
        %v335 = vld [vmem:[%s230 + $0x68] sm:$0xff]
        %v336 = vld [vmem:[%s230 + $0x70] sm:$0xff]
        %v337 = vld [vmem:[%s230 + $0x78] sm:$0xff]
        %v338 = vld [vmem:[%s230 + $0x80] sm:$0xff]
        %v339 = vld [vmem:[%s230 + $0x88] sm:$0xff]
        %v340 = vld [vmem:[%s230 + $0x90] sm:$0xff]
        %v341 = vld [vmem:[%s230 + $0x98] sm:$0xff]
        %v342 = vld [vmem:[%s230 + $0xa0] sm:$0xff]
        %v343 = vld [vmem:[%s230 + $0xa8] sm:$0xff]
        %v344 = vld [vmem:[%s230 + $0xb0] sm:$0xff]
        %v345 = vld [vmem:[%s230 + $0xb8] sm:$0xff]
        %v346 = vld [vmem:[%s230 + $0xc0] sm:$0xff]
        %v347 = vld [vmem:[%s230 + $0xc8] sm:$0xff]
        %v348 = vld [vmem:[%s230 + $0xd0] sm:$0xff]
        %v349 = vld [vmem:[%s230 + $0xd8] sm:$0xff]
        %v350 = vld [vmem:[%s230 + $0xe0] sm:$0xff]
        %v351 = vld [vmem:[%s230 + $0xe8] sm:$0xff]
        %v352 = vld [vmem:[%s230 + $0xf0] sm:$0xff]
        %v353 = vld [vmem:[%s230 + $0xf8] sm:$0xff]
        %v354 = vpack.c.bf16 %v324, %v322
        %v355 = vpack.c.bf16 %v325, %v323
        %v356 = vpack.c.bf16 %v328, %v326
        %v357 = vpack.c.bf16 %v329, %v327
        %v358 = vpack.c.bf16 %v332, %v330
        %v359 = vpack.c.bf16 %v333, %v331
        %v360 = vpack.c.bf16 %v336, %v334
        %v361 = vpack.c.bf16 %v337, %v335
        %v362 = vpack.c.bf16 %v340, %v338
        %v363 = vpack.c.bf16 %v341, %v339
        %v364 = vpack.c.bf16 %v344, %v342
        %v365 = vpack.c.bf16 %v345, %v343
        %v366 = vpack.c.bf16 %v348, %v346
        %v367 = vpack.c.bf16 %v349, %v347
        %v368 = vpack.c.bf16 %v352, %v350
        %v369 = vpack.c.bf16 %v353, %v351
        %v370 = vld [vmem:[%s239] sm:$0xff]
        %v371 = vld [vmem:[%s239 + $0x8] sm:$0xff]
        %v372 = vld [vmem:[%s239 + $0x10] sm:$0xff]
        %v373 = vld [vmem:[%s239 + $0x18] sm:$0xff]
        %v374 = vld [vmem:[%s239 + $0x20] sm:$0xff]
        %v375 = vld [vmem:[%s239 + $0x28] sm:$0xff]
        %v376 = vld [vmem:[%s239 + $0x30] sm:$0xff]
        %v377 = vld [vmem:[%s239 + $0x38] sm:$0xff]
        %v378 = vld [vmem:[%s239 + $0x40] sm:$0xff]
        %v379 = vld [vmem:[%s239 + $0x48] sm:$0xff]
        %v380 = vld [vmem:[%s239 + $0x50] sm:$0xff]
        %v381 = vld [vmem:[%s239 + $0x58] sm:$0xff]
        %v382 = vld [vmem:[%s239 + $0x60] sm:$0xff]
        %v383 = vld [vmem:[%s239 + $0x68] sm:$0xff]
        %v384 = vld [vmem:[%s239 + $0x70] sm:$0xff]
        %v385 = vld [vmem:[%s239 + $0x78] sm:$0xff]
        %v386 = vld [vmem:[%s239 + $0x80] sm:$0xff]
        %v387 = vld [vmem:[%s239 + $0x88] sm:$0xff]
        %v388 = vld [vmem:[%s239 + $0x90] sm:$0xff]
        %v389 = vld [vmem:[%s239 + $0x98] sm:$0xff]
        %v390 = vld [vmem:[%s239 + $0xa0] sm:$0xff]
        %v391 = vld [vmem:[%s239 + $0xa8] sm:$0xff]
        %v392 = vld [vmem:[%s239 + $0xb0] sm:$0xff]
        %v393 = vld [vmem:[%s239 + $0xb8] sm:$0xff]
        %v394 = vld [vmem:[%s239 + $0xc0] sm:$0xff]
        %v395 = vld [vmem:[%s239 + $0xc8] sm:$0xff]
        %v396 = vld [vmem:[%s239 + $0xd0] sm:$0xff]
        %v397 = vld [vmem:[%s239 + $0xd8] sm:$0xff]
        %v398 = vld [vmem:[%s239 + $0xe0] sm:$0xff]
        %v399 = vld [vmem:[%s239 + $0xe8] sm:$0xff]
        %v400 = vld [vmem:[%s239 + $0xf0] sm:$0xff]
        %v401 = vld [vmem:[%s239 + $0xf8] sm:$0xff]
        %v402 = vld [vmem:[%s239 + $0x100] sm:$0xff]
        %v403 = vld [vmem:[%s239 + $0x108] sm:$0xff]
        %v404 = vld [vmem:[%s239 + $0x110] sm:$0xff]
        %v405 = vld [vmem:[%s239 + $0x118] sm:$0xff]
        %v406 = vld [vmem:[%s239 + $0x120] sm:$0xff]
        %v407 = vld [vmem:[%s239 + $0x128] sm:$0xff]
        %v408 = vld [vmem:[%s239 + $0x130] sm:$0xff]
        %v409 = vld [vmem:[%s239 + $0x138] sm:$0xff]
        %v410 = vld [vmem:[%s239 + $0x140] sm:$0xff]
        %v411 = vld [vmem:[%s239 + $0x148] sm:$0xff]
        %v412 = vld [vmem:[%s239 + $0x150] sm:$0xff]
        %v413 = vld [vmem:[%s239 + $0x158] sm:$0xff]
        %v414 = vld [vmem:[%s239 + $0x160] sm:$0xff]
        %v415 = vld [vmem:[%s239 + $0x168] sm:$0xff]
        %v416 = vld [vmem:[%s239 + $0x170] sm:$0xff]
        %v417 = vld [vmem:[%s239 + $0x178] sm:$0xff]
        %v418 = vld [vmem:[%s239 + $0x180] sm:$0xff]
        %v419 = vld [vmem:[%s239 + $0x188] sm:$0xff]
        %v420 = vld [vmem:[%s239 + $0x190] sm:$0xff]
        %v421 = vld [vmem:[%s239 + $0x198] sm:$0xff]
        %v422 = vld [vmem:[%s239 + $0x1a0] sm:$0xff]
        %v423 = vld [vmem:[%s239 + $0x1a8] sm:$0xff]
        %v424 = vld [vmem:[%s239 + $0x1b0] sm:$0xff]
        %v425 = vld [vmem:[%s239 + $0x1b8] sm:$0xff]
        %v426 = vld [vmem:[%s239 + $0x1c0] sm:$0xff]
        %v427 = vld [vmem:[%s239 + $0x1c8] sm:$0xff]
        %v428 = vld [vmem:[%s239 + $0x1d0] sm:$0xff]
        %v429 = vld [vmem:[%s239 + $0x1d8] sm:$0xff]
        %v430 = vld [vmem:[%s239 + $0x1e0] sm:$0xff]
        %v431 = vld [vmem:[%s239 + $0x1e8] sm:$0xff]
        %v432 = vld [vmem:[%s239 + $0x1f0] sm:$0xff]
        %v433 = vld [vmem:[%s239 + $0x1f8] sm:$0xff]
        %v434 = vpack.c.bf16 %v372, %v370
        %v435 = vpack.c.bf16 %v373, %v371
        %v436 = vpack.c.bf16 %v376, %v374
        %v437 = vpack.c.bf16 %v377, %v375
        %v438 = vpack.c.bf16 %v380, %v378
        %v439 = vpack.c.bf16 %v381, %v379
        %v440 = vpack.c.bf16 %v384, %v382
        %v441 = vpack.c.bf16 %v385, %v383
        %v442 = vpack.c.bf16 %v388, %v386
        %v443 = vpack.c.bf16 %v389, %v387
        %v444 = vpack.c.bf16 %v392, %v390
        %v445 = vpack.c.bf16 %v393, %v391
        %v446 = vpack.c.bf16 %v396, %v394
        %v447 = vpack.c.bf16 %v397, %v395
        %v448 = vpack.c.bf16 %v400, %v398
        %v449 = vpack.c.bf16 %v401, %v399
        %v450 = vpack.c.bf16 %v404, %v402
        %v451 = vpack.c.bf16 %v405, %v403
        %v452 = vpack.c.bf16 %v408, %v406
        %v453 = vpack.c.bf16 %v409, %v407
        %v454 = vpack.c.bf16 %v412, %v410
        %v455 = vpack.c.bf16 %v413, %v411
        %v456 = vpack.c.bf16 %v416, %v414
        %v457 = vpack.c.bf16 %v417, %v415
        %v458 = vpack.c.bf16 %v420, %v418
        %v459 = vpack.c.bf16 %v421, %v419
        %v460 = vpack.c.bf16 %v424, %v422
        %v461 = vpack.c.bf16 %v425, %v423
        %v462 = vpack.c.bf16 %v428, %v426
        %v463 = vpack.c.bf16 %v429, %v427
        %v464 = vpack.c.bf16 %v432, %v430
        %v465 = vpack.c.bf16 %v433, %v431
        %v466 = vld [vmem:[#allocation2] sm:$0xff]
        %v467 = vld [vmem:[#allocation2 + $0x8] sm:$0xff]
        %v468 = vld [vmem:[#allocation2 + $0x10] sm:$0xff]
        %v469 = vld [vmem:[#allocation2 + $0x18] sm:$0xff]
        %v470 = vld [vmem:[#allocation2 + $0x20] sm:$0xff]
        %v471 = vld [vmem:[#allocation2 + $0x28] sm:$0xff]
        %v472 = vld [vmem:[#allocation2 + $0x30] sm:$0xff]
        %v473 = vld [vmem:[#allocation2 + $0x38] sm:$0xff]
        %v474 = vld [vmem:[#allocation2 + $0x40] sm:$0xff]
        %v475 = vld [vmem:[#allocation2 + $0x48] sm:$0xff]
        %v476 = vld [vmem:[#allocation2 + $0x50] sm:$0xff]
        %v477 = vld [vmem:[#allocation2 + $0x58] sm:$0xff]
        %v478 = vld [vmem:[#allocation2 + $0x60] sm:$0xff]
        %v479 = vld [vmem:[#allocation2 + $0x68] sm:$0xff]
        %v480 = vld [vmem:[#allocation2 + $0x70] sm:$0xff]
        %v481 = vld [vmem:[#allocation2 + $0x78] sm:$0xff]
        %v482 = vld [vmem:[#allocation2 + $0x80] sm:$0xff]
        %v483 = vld [vmem:[#allocation2 + $0x88] sm:$0xff]
        %v484 = vld [vmem:[#allocation2 + $0x90] sm:$0xff]
        %v485 = vld [vmem:[#allocation2 + $0x98] sm:$0xff]
        %v486 = vld [vmem:[#allocation2 + $0xa0] sm:$0xff]
        %v487 = vld [vmem:[#allocation2 + $0xa8] sm:$0xff]
        %v488 = vld [vmem:[#allocation2 + $0xb0] sm:$0xff]
        %v489 = vld [vmem:[#allocation2 + $0xb8] sm:$0xff]
        %v490 = vld [vmem:[#allocation2 + $0xc0] sm:$0xff]
        %v491 = vld [vmem:[#allocation2 + $0xc8] sm:$0xff]
        %v492 = vld [vmem:[#allocation2 + $0xd0] sm:$0xff]
        %v493 = vld [vmem:[#allocation2 + $0xd8] sm:$0xff]
        %v494 = vld [vmem:[#allocation2 + $0xe0] sm:$0xff]
        %v495 = vld [vmem:[#allocation2 + $0xe8] sm:$0xff]
        %v496 = vld [vmem:[#allocation2 + $0xf0] sm:$0xff]
        %v497 = vld [vmem:[#allocation2 + $0xf8] sm:$0xff]
        %498 = vmatprep.subr.bf16.mxu0 %v449
        %499 = vmatpush1.bf16.msra.mxu0 %v448
        %500 = vmatprep.subr.bf16.mxu0 %v447
        %501 = vmatpush1.bf16.msra.mxu0 %v446
        %502 = vmatprep.subr.bf16.mxu0 %v445
        %503 = vmatpush1.bf16.msra.mxu0 %v444
        %504 = vmatprep.subr.bf16.mxu0 %v443
        %505 = vmatpush1.bf16.msra.mxu0 %v442
        %506 = vmatprep.subr.bf16.mxu0 %v441
        %507 = vmatpush1.bf16.msra.mxu0 %v440
        %508 = vmatprep.subr.bf16.mxu0 %v439
        %509 = vmatpush1.bf16.msra.mxu0 %v438
        %510 = vmatprep.subr.bf16.mxu0 %v437
        %511 = vmatpush1.bf16.msra.mxu0 %v436
        %512 = vmatprep.subr.bf16.mxu0 %v435
        %513 = vmatpush1.bf16.msra.mxu0 %v434
        %514 = vmatprep.subr.bf16.mxu0 %v465
        %515 = vmatpush2.bf16.msra.mxu0 %v464
        %516 = vmatprep.subr.bf16.mxu0 %v463
        %517 = vmatpush2.bf16.msra.mxu0 %v462
        %518 = vmatprep.subr.bf16.mxu0 %v461
        %519 = vmatpush2.bf16.msra.mxu0 %v460
        %520 = vmatprep.subr.bf16.mxu0 %v459
        %521 = vmatpush2.bf16.msra.mxu0 %v458
        %522 = vmatprep.subr.bf16.mxu0 %v457
        %523 = vmatpush2.bf16.msra.mxu0 %v456
        %524 = vmatprep.subr.bf16.mxu0 %v455
        %525 = vmatpush2.bf16.msra.mxu0 %v454
        %526 = vmatprep.subr.bf16.mxu0 %v453
        %527 = vmatpush2.bf16.msra.mxu0 %v452
        %528 = vmatprep.subr.bf16.mxu0 %v451
        %529 = vmatpush2.bf16.msra.mxu0 %v450
        %530 = vmatprep.mubr.bf16.mxu0 %v355
        %531 = vmatmul.mubr.bf16.gmra.mxu0 %v354
        %v532 = vpop.f32.mrf.mxu0
        %v533 = vadd.f32 0.0, %v532
        %v534 = vpop.f32.mrf.mxu0
        %v535 = vadd.f32 0.0, %v534
        %v536 = vpop.f32.mrf.mxu0
        %v537 = vadd.f32 0.0, %v536
        %v538 = vpop.f32.mrf.mxu0
        %v539 = vadd.f32 0.0, %v538
        %540 = vmatprep.mubr.bf16.mxu0 %v357
        %541 = vmatmul.mubr.bf16.gmra.mxu0 %v356
        %v542 = vpop.f32.mrf.mxu0
        %v543 = vadd.f32 0.0, %v542
        %v544 = vpop.f32.mrf.mxu0
        %v545 = vadd.f32 0.0, %v544
        %v546 = vpop.f32.mrf.mxu0
        %v547 = vadd.f32 0.0, %v546
        %v548 = vpop.f32.mrf.mxu0
        %v549 = vadd.f32 0.0, %v548
        %550 = vmatprep.mubr.bf16.mxu0 %v359
        %551 = vmatmul.mubr.bf16.gmra.mxu0 %v358
        %v552 = vpop.f32.mrf.mxu0
        %v553 = vadd.f32 0.0, %v552
        %v554 = vpop.f32.mrf.mxu0
        %v555 = vadd.f32 0.0, %v554
        %v556 = vpop.f32.mrf.mxu0
        %v557 = vadd.f32 0.0, %v556
        %v558 = vpop.f32.mrf.mxu0
        %v559 = vadd.f32 0.0, %v558
        %560 = vmatprep.mubr.bf16.mxu0 %v361
        %561 = vmatmul.mubr.bf16.gmra.mxu0 %v360
        %v562 = vpop.f32.mrf.mxu0
        %v563 = vadd.f32 0.0, %v562
        %v564 = vpop.f32.mrf.mxu0
        %v565 = vadd.f32 0.0, %v564
        %v566 = vpop.f32.mrf.mxu0
        %v567 = vadd.f32 0.0, %v566
        %v568 = vpop.f32.mrf.mxu0
        %v569 = vadd.f32 0.0, %v568
        %570 = vmatprep.mubr.bf16.mxu0 %v363
        %571 = vmatmul.mubr.bf16.gmra.mxu0 %v362
        %v572 = vpop.f32.mrf.mxu0
        %v573 = vadd.f32 0.0, %v572
        %v574 = vpop.f32.mrf.mxu0
        %v575 = vadd.f32 0.0, %v574
        %v576 = vpop.f32.mrf.mxu0
        %v577 = vadd.f32 0.0, %v576
        %v578 = vpop.f32.mrf.mxu0
        %v579 = vadd.f32 0.0, %v578
        %580 = vmatprep.mubr.bf16.mxu0 %v365
        %581 = vmatmul.mubr.bf16.gmra.mxu0 %v364
        %v582 = vpop.f32.mrf.mxu0
        %v583 = vadd.f32 0.0, %v582
        %v584 = vpop.f32.mrf.mxu0
        %v585 = vadd.f32 0.0, %v584
        %v586 = vpop.f32.mrf.mxu0
        %v587 = vadd.f32 0.0, %v586
        %v588 = vpop.f32.mrf.mxu0
        %v589 = vadd.f32 0.0, %v588
        %590 = vmatprep.mubr.bf16.mxu0 %v367
        %591 = vmatmul.mubr.bf16.gmra.mxu0 %v366
        %v592 = vpop.f32.mrf.mxu0
        %v593 = vadd.f32 0.0, %v592
        %v594 = vpop.f32.mrf.mxu0
        %v595 = vadd.f32 0.0, %v594
        %v596 = vpop.f32.mrf.mxu0
        %v597 = vadd.f32 0.0, %v596
        %v598 = vpop.f32.mrf.mxu0
        %v599 = vadd.f32 0.0, %v598
        %600 = vmatprep.mubr.bf16.mxu0 %v369
        %601 = vmatmul.mubr.bf16.gmra.mxu0 %v368
        %v602 = vpop.f32.mrf.mxu0
        %v603 = vadd.f32 0.0, %v602
        %v604 = vpop.f32.mrf.mxu0
        %v605 = vadd.f32 0.0, %v604
        %v606 = vpop.f32.mrf.mxu0
        %v607 = vadd.f32 0.0, %v606
        %v608 = vpop.f32.mrf.mxu0
        %v609 = vadd.f32 0.0, %v608
        %610 = vdwg.mxu0
        %v611 = vadd.f32 %v466, %v533
        %v612 = vadd.f32 %v467, %v535
        %v613 = vadd.f32 %v468, %v537
        %v614 = vadd.f32 %v469, %v539
        %v615 = vadd.f32 %v470, %v543
        %v616 = vadd.f32 %v471, %v545
        %v617 = vadd.f32 %v472, %v547
        %v618 = vadd.f32 %v473, %v549
        %v619 = vadd.f32 %v474, %v553
        %v620 = vadd.f32 %v475, %v555
        %v621 = vadd.f32 %v476, %v557
        %v622 = vadd.f32 %v477, %v559
        %v623 = vadd.f32 %v478, %v563
        %v624 = vadd.f32 %v479, %v565
        %v625 = vadd.f32 %v480, %v567
        %v626 = vadd.f32 %v481, %v569
        %v627 = vadd.f32 %v482, %v573
        %v628 = vadd.f32 %v483, %v575
        %v629 = vadd.f32 %v484, %v577
        %v630 = vadd.f32 %v485, %v579
        %v631 = vadd.f32 %v486, %v583
        %v632 = vadd.f32 %v487, %v585
        %v633 = vadd.f32 %v488, %v587
        %v634 = vadd.f32 %v489, %v589
        %v635 = vadd.f32 %v490, %v593
        %v636 = vadd.f32 %v491, %v595
        %v637 = vadd.f32 %v492, %v597
        %v638 = vadd.f32 %v493, %v599
        %v639 = vadd.f32 %v494, %v603
        %v640 = vadd.f32 %v495, %v605
        %v641 = vadd.f32 %v496, %v607
        %v642 = vadd.f32 %v497, %v609
        %643 = vst [vmem:[#allocation2] sm:$0xff] %v611
        %644 = vst [vmem:[#allocation2 + $0x8] sm:$0xff] %v612
        %645 = vst [vmem:[#allocation2 + $0x10] sm:$0xff] %v613
        %646 = vst [vmem:[#allocation2 + $0x18] sm:$0xff] %v614
        %647 = vst [vmem:[#allocation2 + $0x20] sm:$0xff] %v615
        %648 = vst [vmem:[#allocation2 + $0x28] sm:$0xff] %v616
        %649 = vst [vmem:[#allocation2 + $0x30] sm:$0xff] %v617
        %650 = vst [vmem:[#allocation2 + $0x38] sm:$0xff] %v618
        %651 = vst [vmem:[#allocation2 + $0x40] sm:$0xff] %v619
        %652 = vst [vmem:[#allocation2 + $0x48] sm:$0xff] %v620
        %653 = vst [vmem:[#allocation2 + $0x50] sm:$0xff] %v621
        %654 = vst [vmem:[#allocation2 + $0x58] sm:$0xff] %v622
        %655 = vst [vmem:[#allocation2 + $0x60] sm:$0xff] %v623
        %656 = vst [vmem:[#allocation2 + $0x68] sm:$0xff] %v624
        %657 = vst [vmem:[#allocation2 + $0x70] sm:$0xff] %v625
        %658 = vst [vmem:[#allocation2 + $0x78] sm:$0xff] %v626
        %659 = vst [vmem:[#allocation2 + $0x80] sm:$0xff] %v627
        %660 = vst [vmem:[#allocation2 + $0x88] sm:$0xff] %v628
        %661 = vst [vmem:[#allocation2 + $0x90] sm:$0xff] %v629
        %662 = vst [vmem:[#allocation2 + $0x98] sm:$0xff] %v630
        %663 = vst [vmem:[#allocation2 + $0xa0] sm:$0xff] %v631
        %664 = vst [vmem:[#allocation2 + $0xa8] sm:$0xff] %v632
        %665 = vst [vmem:[#allocation2 + $0xb0] sm:$0xff] %v633
        %666 = vst [vmem:[#allocation2 + $0xb8] sm:$0xff] %v634
        %667 = vst [vmem:[#allocation2 + $0xc0] sm:$0xff] %v635
        %668 = vst [vmem:[#allocation2 + $0xc8] sm:$0xff] %v636
        %669 = vst [vmem:[#allocation2 + $0xd0] sm:$0xff] %v637
        %670 = vst [vmem:[#allocation2 + $0xd8] sm:$0xff] %v638
        %671 = vst [vmem:[#allocation2 + $0xe0] sm:$0xff] %v639
        %672 = vst [vmem:[#allocation2 + $0xe8] sm:$0xff] %v640
        %673 = vst [vmem:[#allocation2 + $0xf0] sm:$0xff] %v641
        %674 = vst [vmem:[#allocation2 + $0xf8] sm:$0xff] %v642
        %p675 = scmp.eq.s32.totalorder %s28, 1
        // Predicated region
        $region49: #{tpu_custom_call.1} parent=31 // pred_check
          %p676 = pneg %p675
        $region50: #{tpu_custom_call.1} parent=31 // pred_check_branch
          %678 = sbr.rel (%p676) target = $region52
        $region51: #{tpu_custom_call.1} parent=31 // pred_region
          %v679 = vld [vmem:[%s248] ss:$4 sm:$0x3]
          %s680 = scalar_lea.vmem %s248, 1 [#allocation8]
          %v681 = vld [vmem:[%s680] ss:$4 sm:$0x3]
          %s682 = scalar_lea.vmem %s248, 2 [#allocation8]
          %v683 = vld [vmem:[%s682] ss:$4 sm:$0x3]
          %v684 = vld [vmem:[#allocation2] sm:$0xff]
          %v685 = vld [vmem:[#allocation2 + $0x8] sm:$0xff]
          %v686 = vld [vmem:[#allocation2 + $0x10] sm:$0xff]
          %v687 = vld [vmem:[#allocation2 + $0x18] sm:$0xff]
          %v688 = vld [vmem:[#allocation2 + $0x20] sm:$0xff]
          %v689 = vld [vmem:[#allocation2 + $0x28] sm:$0xff]
          %v690 = vld [vmem:[#allocation2 + $0x30] sm:$0xff]
          %v691 = vld [vmem:[#allocation2 + $0x38] sm:$0xff]
          %v692 = vld [vmem:[#allocation2 + $0x40] sm:$0xff]
          %v693 = vld [vmem:[#allocation2 + $0x48] sm:$0xff]
          %v694 = vld [vmem:[#allocation2 + $0x50] sm:$0xff]
          %v695 = vld [vmem:[#allocation2 + $0x58] sm:$0xff]
          %v696 = vld [vmem:[#allocation2 + $0x60] sm:$0xff]
          %v697 = vld [vmem:[#allocation2 + $0x68] sm:$0xff]
          %v698 = vld [vmem:[#allocation2 + $0x70] sm:$0xff]
          %v699 = vld [vmem:[#allocation2 + $0x78] sm:$0xff]
          %v700 = vld [vmem:[#allocation2 + $0x80] sm:$0xff]
          %v701 = vld [vmem:[#allocation2 + $0x88] sm:$0xff]
          %v702 = vld [vmem:[#allocation2 + $0x90] sm:$0xff]
          %v703 = vld [vmem:[#allocation2 + $0x98] sm:$0xff]
          %v704 = vld [vmem:[#allocation2 + $0xa0] sm:$0xff]
          %v705 = vld [vmem:[#allocation2 + $0xa8] sm:$0xff]
          %v706 = vld [vmem:[#allocation2 + $0xb0] sm:$0xff]
          %v707 = vld [vmem:[#allocation2 + $0xb8] sm:$0xff]
          %v708 = vld [vmem:[#allocation2 + $0xc0] sm:$0xff]
          %v709 = vld [vmem:[#allocation2 + $0xc8] sm:$0xff]
          %v710 = vld [vmem:[#allocation2 + $0xd0] sm:$0xff]
          %v711 = vld [vmem:[#allocation2 + $0xd8] sm:$0xff]
          %v712 = vld [vmem:[#allocation2 + $0xe0] sm:$0xff]
          %v713 = vld [vmem:[#allocation2 + $0xe8] sm:$0xff]
          %v714 = vld [vmem:[#allocation2 + $0xf0] sm:$0xff]
          %v715 = vld [vmem:[#allocation2 + $0xf8] sm:$0xff]
          %v717 = vlaneseq
          %v718 = vshrl.u32 %v717, 7
          %v719 = vsub.s32 0, %v718
          %v720 = vrot.slane %v679, %v719
          %v721 = vlaneseq
          %v722 = vshrl.u32 %v721, 7
          %v723 = vsub.s32 1, %v722
          %v724 = vrot.slane %v679, %v723
          %v727 = vadd.f32 %v684, %v720
          %v728 = vadd.f32 %v685, %v724
          %v729 = vadd.f32 %v686, %v720
          %v730 = vadd.f32 %v687, %v724
          %v731 = vadd.f32 %v688, %v720
          %v732 = vadd.f32 %v689, %v724
          %v733 = vadd.f32 %v690, %v720
          %v734 = vadd.f32 %v691, %v724
          %v735 = vadd.f32 %v692, %v720
          %v736 = vadd.f32 %v693, %v724
          %v737 = vadd.f32 %v694, %v720
          %v738 = vadd.f32 %v695, %v724
          %v739 = vadd.f32 %v696, %v720
          %v740 = vadd.f32 %v697, %v724
          %v741 = vadd.f32 %v698, %v720
          %v742 = vadd.f32 %v699, %v724
          %v743 = vadd.f32 %v700, %v720
          %v744 = vadd.f32 %v701, %v724
          %v745 = vadd.f32 %v702, %v720
          %v746 = vadd.f32 %v703, %v724
          %v747 = vadd.f32 %v704, %v720
          %v748 = vadd.f32 %v705, %v724
          %v749 = vadd.f32 %v706, %v720
          %v750 = vadd.f32 %v707, %v724
          %v751 = vadd.f32 %v708, %v720
          %v752 = vadd.f32 %v709, %v724
          %v753 = vadd.f32 %v710, %v720
          %v754 = vadd.f32 %v711, %v724
          %v755 = vadd.f32 %v712, %v720
          %v756 = vadd.f32 %v713, %v724
          %v757 = vadd.f32 %v714, %v720
          %v758 = vadd.f32 %v715, %v724
          %v759 = vmax.f32 %v727, 0.0
          %v760 = vmax.f32 %v728, 0.0
          %v761 = vmax.f32 %v729, 0.0
          %v762 = vmax.f32 %v730, 0.0
          %v763 = vmax.f32 %v731, 0.0
          %v764 = vmax.f32 %v732, 0.0
          %v765 = vmax.f32 %v733, 0.0
          %v766 = vmax.f32 %v734, 0.0
          %v767 = vmax.f32 %v735, 0.0
          %v768 = vmax.f32 %v736, 0.0
          %v769 = vmax.f32 %v737, 0.0
          %v770 = vmax.f32 %v738, 0.0
          %v771 = vmax.f32 %v739, 0.0
          %v772 = vmax.f32 %v740, 0.0
          %v773 = vmax.f32 %v741, 0.0
          %v774 = vmax.f32 %v742, 0.0
          %v775 = vmax.f32 %v743, 0.0
          %v776 = vmax.f32 %v744, 0.0
          %v777 = vmax.f32 %v745, 0.0
          %v778 = vmax.f32 %v746, 0.0
          %v779 = vmax.f32 %v747, 0.0
          %v780 = vmax.f32 %v748, 0.0
          %v781 = vmax.f32 %v749, 0.0
          %v782 = vmax.f32 %v750, 0.0
          %v783 = vmax.f32 %v751, 0.0
          %v784 = vmax.f32 %v752, 0.0
          %v785 = vmax.f32 %v753, 0.0
          %v786 = vmax.f32 %v754, 0.0
          %v787 = vmax.f32 %v755, 0.0
          %v788 = vmax.f32 %v756, 0.0
          %v789 = vmax.f32 %v757, 0.0
          %v790 = vmax.f32 %v758, 0.0
          %v791 = vadd.f32 %v759, %v761
          %v792 = vadd.f32 %v791, %v763
          %v793 = vadd.f32 %v792, %v765
          %v794 = vadd.f32 %v793, %v767
          %v795 = vadd.f32 %v794, %v769
          %v796 = vadd.f32 %v795, %v771
          %v797 = vadd.f32 %v796, %v773
          %v798 = vadd.f32 %v797, %v775
          %v799 = vadd.f32 %v798, %v777
          %v800 = vadd.f32 %v799, %v779
          %v801 = vadd.f32 %v800, %v781
          %v802 = vadd.f32 %v801, %v783
          %v803 = vadd.f32 %v802, %v785
          %v804 = vadd.f32 %v803, %v787
          %v805 = vadd.f32 %v804, %v789
          %v806 = vrot.slane %v805, 4
          %v807 = vadd.f32 %v805, %v806
          %v808 = vrot.slane %v807, 2
          %v809 = vadd.f32 %v807, %v808
          %v810 = vrot.slane %v809, 1
          %v811 = vadd.f32 %v809, %v810
          %v812 = vadd.f32 %v760, %v762
          %v813 = vadd.f32 %v812, %v764
          %v814 = vadd.f32 %v813, %v766
          %v815 = vadd.f32 %v814, %v768
          %v816 = vadd.f32 %v815, %v770
          %v817 = vadd.f32 %v816, %v772
          %v818 = vadd.f32 %v817, %v774
          %v819 = vadd.f32 %v818, %v776
          %v820 = vadd.f32 %v819, %v778
          %v821 = vadd.f32 %v820, %v780
          %v822 = vadd.f32 %v821, %v782
          %v823 = vadd.f32 %v822, %v784
          %v824 = vadd.f32 %v823, %v786
          %v825 = vadd.f32 %v824, %v788
          %v826 = vadd.f32 %v825, %v790
          %v827 = vrot.slane %v826, 4
          %v828 = vadd.f32 %v826, %v827
          %v829 = vrot.slane %v828, 2
          %v830 = vadd.f32 %v828, %v829
          %v831 = vrot.slane %v830, 1
          %v832 = vadd.f32 %v830, %v831
          %v833 = vmul.f32 %v811, 0.0078125
          %v834 = vmul.f32 %v832, 0.0078125
          %v835 = vmul.f32 %v759, %v759
          %v836 = vmul.f32 %v760, %v760
          %v837 = vmul.f32 %v761, %v761
          %v838 = vmul.f32 %v762, %v762
          %v839 = vmul.f32 %v763, %v763
          %v840 = vmul.f32 %v764, %v764
          %v841 = vmul.f32 %v765, %v765
          %v842 = vmul.f32 %v766, %v766
          %v843 = vmul.f32 %v767, %v767
          %v844 = vmul.f32 %v768, %v768
          %v845 = vmul.f32 %v769, %v769
          %v846 = vmul.f32 %v770, %v770
          %v847 = vmul.f32 %v771, %v771
          %v848 = vmul.f32 %v772, %v772
          %v849 = vmul.f32 %v773, %v773
          %v850 = vmul.f32 %v774, %v774
          %v851 = vmul.f32 %v775, %v775
          %v852 = vmul.f32 %v776, %v776
          %v853 = vmul.f32 %v777, %v777
          %v854 = vmul.f32 %v778, %v778
          %v855 = vmul.f32 %v779, %v779
          %v856 = vmul.f32 %v780, %v780
          %v857 = vmul.f32 %v781, %v781
          %v858 = vmul.f32 %v782, %v782
          %v859 = vmul.f32 %v783, %v783
          %v860 = vmul.f32 %v784, %v784
          %v861 = vmul.f32 %v785, %v785
          %v862 = vmul.f32 %v786, %v786
          %v863 = vmul.f32 %v787, %v787
          %v864 = vmul.f32 %v788, %v788
          %v865 = vmul.f32 %v789, %v789
          %v866 = vmul.f32 %v790, %v790
          %v867 = vadd.f32 %v835, %v837
          %v868 = vadd.f32 %v867, %v839
          %v869 = vadd.f32 %v868, %v841
          %v870 = vadd.f32 %v869, %v843
          %v871 = vadd.f32 %v870, %v845
          %v872 = vadd.f32 %v871, %v847
          %v873 = vadd.f32 %v872, %v849
          %v874 = vadd.f32 %v873, %v851
          %v875 = vadd.f32 %v874, %v853
          %v876 = vadd.f32 %v875, %v855
          %v877 = vadd.f32 %v876, %v857
          %v878 = vadd.f32 %v877, %v859
          %v879 = vadd.f32 %v878, %v861
          %v880 = vadd.f32 %v879, %v863
          %v881 = vadd.f32 %v880, %v865
          %v882 = vrot.slane %v881, 4
          %v883 = vadd.f32 %v881, %v882
          %v884 = vrot.slane %v883, 2
          %v885 = vadd.f32 %v883, %v884
          %v886 = vrot.slane %v885, 1
          %v887 = vadd.f32 %v885, %v886
          %v888 = vadd.f32 %v836, %v838
          %v889 = vadd.f32 %v888, %v840
          %v890 = vadd.f32 %v889, %v842
          %v891 = vadd.f32 %v890, %v844
          %v892 = vadd.f32 %v891, %v846
          %v893 = vadd.f32 %v892, %v848
          %v894 = vadd.f32 %v893, %v850
          %v895 = vadd.f32 %v894, %v852
          %v896 = vadd.f32 %v895, %v854
          %v897 = vadd.f32 %v896, %v856
          %v898 = vadd.f32 %v897, %v858
          %v899 = vadd.f32 %v898, %v860
          %v900 = vadd.f32 %v899, %v862
          %v901 = vadd.f32 %v900, %v864
          %v902 = vadd.f32 %v901, %v866
          %v903 = vrot.slane %v902, 4
          %v904 = vadd.f32 %v902, %v903
          %v905 = vrot.slane %v904, 2
          %v906 = vadd.f32 %v904, %v905
          %v907 = vrot.slane %v906, 1
          %v908 = vadd.f32 %v906, %v907
          %v909 = vmul.f32 %v887, 0.0078125
          %v910 = vmul.f32 %v908, 0.0078125
          %v911 = vmul.f32 %v833, %v833
          %v912 = vmul.f32 %v834, %v834
          %v913 = vsub.f32 %v909, %v911
          %v914 = vsub.f32 %v910, %v912
          %v915 = vmax.f32 %v913, 0.0
          %v916 = vmax.f32 %v914, 0.0
          %v917 = vadd.f32 %v915, 1e-05
          %v918 = vadd.f32 %v916, 1e-05
          %v919 = vrsqrt.pop %v917
          %v920 = vrsqrt.pop %v918
          %v923 = vcombine.low %v919, %v920
          %v925 = vunpack.c.l.s4 1966171168
          %v926 = vunpack.c.0.s8 %v925
          %v927 = vlaneseq
          %v928 = vshrl.u32 %v927, 7
          %v929 = vsub.s32 %v926, %v928
          %v930 = vrot.slane %v923, %v929
          %v932 = vunpack.c.l.s4 1966171168
          %v933 = vunpack.c.0.s8 %v932
          %v934 = vlaneseq
          %v935 = vshrl.u32 %v934, 7
          %v936 = vsub.s32 %v933, %v935
          %v937 = vrot.slane %v930, %v936
          %v939 = vmul.f32 %v681, %v937
          %v941 = vlaneseq
          %v942 = vshrl.u32 %v941, 7
          %v943 = vsub.s32 0, %v942
          %v944 = vrot.slane %v939, %v943
          %v945 = vlaneseq
          %v946 = vshrl.u32 %v945, 7
          %v947 = vsub.s32 1, %v946
          %v948 = vrot.slane %v939, %v947
          %v951 = vmul.f32 %v833, %v944
          %v952 = vmul.f32 %v834, %v948
          %v955 = vcombine.low %v951, %v952
          %v957 = vunpack.c.l.s4 1966171168
          %v958 = vunpack.c.0.s8 %v957
          %v959 = vlaneseq
          %v960 = vshrl.u32 %v959, 7
          %v961 = vsub.s32 %v958, %v960
          %v962 = vrot.slane %v955, %v961
          %v964 = vunpack.c.l.s4 1966171168
          %v965 = vunpack.c.0.s8 %v964
          %v966 = vlaneseq
          %v967 = vshrl.u32 %v966, 7
          %v968 = vsub.s32 %v965, %v967
          %v969 = vrot.slane %v962, %v968
          %v971 = vsub.f32 %v683, %v969
          %v972 = vmul.f32 %v759, %v944
          %v973 = vmul.f32 %v760, %v948
          %v974 = vmul.f32 %v761, %v944
          %v975 = vmul.f32 %v762, %v948
          %v976 = vmul.f32 %v763, %v944
          %v977 = vmul.f32 %v764, %v948
          %v978 = vmul.f32 %v765, %v944
          %v979 = vmul.f32 %v766, %v948
          %v980 = vmul.f32 %v767, %v944
          %v981 = vmul.f32 %v768, %v948
          %v982 = vmul.f32 %v769, %v944
          %v983 = vmul.f32 %v770, %v948
          %v984 = vmul.f32 %v771, %v944
          %v985 = vmul.f32 %v772, %v948
          %v986 = vmul.f32 %v773, %v944
          %v987 = vmul.f32 %v774, %v948
          %v988 = vmul.f32 %v775, %v944
          %v989 = vmul.f32 %v776, %v948
          %v990 = vmul.f32 %v777, %v944
          %v991 = vmul.f32 %v778, %v948
          %v992 = vmul.f32 %v779, %v944
          %v993 = vmul.f32 %v780, %v948
          %v994 = vmul.f32 %v781, %v944
          %v995 = vmul.f32 %v782, %v948
          %v996 = vmul.f32 %v783, %v944
          %v997 = vmul.f32 %v784, %v948
          %v998 = vmul.f32 %v785, %v944
          %v999 = vmul.f32 %v786, %v948
          %v1000 = vmul.f32 %v787, %v944
          %v1001 = vmul.f32 %v788, %v948
          %v1002 = vmul.f32 %v789, %v944
          %v1003 = vmul.f32 %v790, %v948
          %v1005 = vlaneseq
          %v1006 = vshrl.u32 %v1005, 7
          %v1007 = vsub.s32 0, %v1006
          %v1008 = vrot.slane %v971, %v1007
          %v1009 = vlaneseq
          %v1010 = vshrl.u32 %v1009, 7
          %v1011 = vsub.s32 1, %v1010
          %v1012 = vrot.slane %v971, %v1011
          %v1015 = vadd.f32 %v972, %v1008
          %v1016 = vadd.f32 %v973, %v1012
          %v1017 = vadd.f32 %v974, %v1008
          %v1018 = vadd.f32 %v975, %v1012
          %v1019 = vadd.f32 %v976, %v1008
          %v1020 = vadd.f32 %v977, %v1012
          %v1021 = vadd.f32 %v978, %v1008
          %v1022 = vadd.f32 %v979, %v1012
          %v1023 = vadd.f32 %v980, %v1008
          %v1024 = vadd.f32 %v981, %v1012
          %v1025 = vadd.f32 %v982, %v1008
          %v1026 = vadd.f32 %v983, %v1012
          %v1027 = vadd.f32 %v984, %v1008
          %v1028 = vadd.f32 %v985, %v1012
          %v1029 = vadd.f32 %v986, %v1008
          %v1030 = vadd.f32 %v987, %v1012
          %v1031 = vadd.f32 %v988, %v1008
          %v1032 = vadd.f32 %v989, %v1012
          %v1033 = vadd.f32 %v990, %v1008
          %v1034 = vadd.f32 %v991, %v1012
          %v1035 = vadd.f32 %v992, %v1008
          %v1036 = vadd.f32 %v993, %v1012
          %v1037 = vadd.f32 %v994, %v1008
          %v1038 = vadd.f32 %v995, %v1012
          %v1039 = vadd.f32 %v996, %v1008
          %v1040 = vadd.f32 %v997, %v1012
          %v1041 = vadd.f32 %v998, %v1008
          %v1042 = vadd.f32 %v999, %v1012
          %v1043 = vadd.f32 %v1000, %v1008
          %v1044 = vadd.f32 %v1001, %v1012
          %v1045 = vadd.f32 %v1002, %v1008
          %v1046 = vadd.f32 %v1003, %v1012
          %1047 = vst [vmem:[%s280] sm:$0xff] %v1015
          %1048 = vst [vmem:[%s280 + $0x8] sm:$0xff] %v1016
          %1049 = vst [vmem:[%s280 + $0x10] sm:$0xff] %v1017
          %1050 = vst [vmem:[%s280 + $0x18] sm:$0xff] %v1018
          %1051 = vst [vmem:[%s280 + $0x20] sm:$0xff] %v1019
          %1052 = vst [vmem:[%s280 + $0x28] sm:$0xff] %v1020
          %1053 = vst [vmem:[%s280 + $0x30] sm:$0xff] %v1021
          %1054 = vst [vmem:[%s280 + $0x38] sm:$0xff] %v1022
          %1055 = vst [vmem:[%s280 + $0x40] sm:$0xff] %v1023
          %1056 = vst [vmem:[%s280 + $0x48] sm:$0xff] %v1024
          %1057 = vst [vmem:[%s280 + $0x50] sm:$0xff] %v1025
          %1058 = vst [vmem:[%s280 + $0x58] sm:$0xff] %v1026
          %1059 = vst [vmem:[%s280 + $0x60] sm:$0xff] %v1027
          %1060 = vst [vmem:[%s280 + $0x68] sm:$0xff] %v1028
          %1061 = vst [vmem:[%s280 + $0x70] sm:$0xff] %v1029
          %1062 = vst [vmem:[%s280 + $0x78] sm:$0xff] %v1030
          %1063 = vst [vmem:[%s280 + $0x80] sm:$0xff] %v1031
          %1064 = vst [vmem:[%s280 + $0x88] sm:$0xff] %v1032
          %1065 = vst [vmem:[%s280 + $0x90] sm:$0xff] %v1033
          %1066 = vst [vmem:[%s280 + $0x98] sm:$0xff] %v1034
          %1067 = vst [vmem:[%s280 + $0xa0] sm:$0xff] %v1035
          %1068 = vst [vmem:[%s280 + $0xa8] sm:$0xff] %v1036
          %1069 = vst [vmem:[%s280 + $0xb0] sm:$0xff] %v1037
          %1070 = vst [vmem:[%s280 + $0xb8] sm:$0xff] %v1038
          %1071 = vst [vmem:[%s280 + $0xc0] sm:$0xff] %v1039
          %1072 = vst [vmem:[%s280 + $0xc8] sm:$0xff] %v1040
          %1073 = vst [vmem:[%s280 + $0xd0] sm:$0xff] %v1041
          %1074 = vst [vmem:[%s280 + $0xd8] sm:$0xff] %v1042
          %1075 = vst [vmem:[%s280 + $0xe0] sm:$0xff] %v1043
          %1076 = vst [vmem:[%s280 + $0xe8] sm:$0xff] %v1044
          %1077 = vst [vmem:[%s280 + $0xf0] sm:$0xff] %v1045
          %1078 = vst [vmem:[%s280 + $0xf8] sm:$0xff] %v1046
        $region52: #{tpu_custom_call.1} parent=31 // pred_fallthru
          _
        %s1079 = sand.u32 %s123, 1
        %s1080 = scalar_lea.sflag [#allocation5], %s1079
        %s1081 = sand.u32 %s123, 1
        %s1082 = smul.addr %s1081, 256
        %s1083 = scalar_lea.vmem [#allocation9], %s1082
        // Predicated region
        $region53: #{tpu_custom_call.1} parent=31 // pred_check
          %p1084 = pneg %p133
        $region54: #{tpu_custom_call.1} parent=31 // pred_check_branch
          %1086 = sbr.rel (%p1084) target = $region56
        $region55: #{tpu_custom_call.1} parent=31 // pred_region
          %s1087 = smul.u32 2, %s27
          %s1089 = ssub.s32 4096, 4096
          %1090 = vsyncadd %s1080, %s1089
          %s1091 = smul.addr %s1087, 128
          %s1092 = scalar_lea.hbm %s3, %s1091
          %s1093 = sshll.u32 %s1083, 4
          %s1094 = int_to_ptr.vmem [resolvable:$true] %s1093
          %1099 = dma.vmem_to_hbm [thread:$0]  %s1094, 4096, %s1092, %s1080, 256, 512, 16
        $region56: #{tpu_custom_call.1} parent=31 // pred_fallthru
          _
      $region32: #{tpu_custom_call.1} parent=5 // pred_fallthru
        _
      %p1100 = scmp.le.s32.totalorder 2, %s18
      // Predicated region
      $region57: #{tpu_custom_call.1} parent=5 // pred_check
        %p1101 = pneg %p1100
      $region58: #{tpu_custom_call.1} parent=5 // pred_check_branch
        %1103 = sbr.rel (%p1101) target = $region60
      $region59: #{tpu_custom_call.1} parent=5 // pred_region
        %s1104 = ssub.s32 %s18, 2
        // Predicated region
        $region61: #{tpu_custom_call.1} parent=59 // pred_check
          %p1105 = pneg %p139
        $region62: #{tpu_custom_call.1} parent=59 // pred_check_branch
          %1107 = sbr.rel (%p1105) target = $region64
        $region63: #{tpu_custom_call.1} parent=59 // pred_region
          %s1108 = sand.u32 %s124, 1
          %s1109 = scalar_lea.sflag [#allocation5], %s1108
          %s1110 = sand.u32 %s124, 1
          %s1111 = smul.addr %s1110, 256
          %s1112 = scalar_lea.vmem [#allocation9], %s1111
          %1113 = dma.done %s1109, 4096
        $region64: #{tpu_custom_call.1} parent=59 // pred_fallthru
          _
      $region60: #{tpu_custom_call.1} parent=5 // pred_fallthru
        _
    $region6: #{tpu_custom_call.1} parent=1 // loop_footer
      %s22 = sadd.s32 1, %s18
    $region7: #{tpu_custom_call.1} parent=1 // loop_footer_branch
      %17 = sbr.rel target = $region3
    $region8: #{tpu_custom_call.1} parent=1 // loop_exit
      _
    %1114 = vsyncpa [#allocation4], 1
    %s1115 = scalar_lea.sflag [#allocation4], 1
    %1116 = vsyncpa %s1115, 1
    %1117 = vsyncpa [#allocation7], 1
    %s1118 = scalar_lea.sflag [#allocation7], 1
    %1119 = vsyncpa %s1118, 1
    %1120 = vsyncpa [#allocation5], 1
    %s1121 = scalar_lea.sflag [#allocation5], 1
    %1122 = vsyncpa %s1121, 1

</llo_original>
